<compile_context>
chip_gen: v7x
topology: tpu7x:2x2x1
jax: 0.10.0
libtpu: 0.0.40
codegen_flags: <defaults>
</compile_context>

<pallas_src>
import math
import functools

import jax
import jax.numpy as jnp
from jax.experimental import pallas as pl
from jax.experimental.pallas import tpu as pltpu

_PARALLEL = pltpu.CompilerParams(dimension_semantics=("parallel",))


# ----------------------------------------------------------------------------
# Pallas kernels
# ----------------------------------------------------------------------------

def _mm_kernel(x_ref, *rest, do_ln, add_res, add_x):
    """[LayerNorm ->] matmul(bf16 MXU, f32 acc) + bias [-> + residual]."""
    idx = 0
    if do_ln:
        g_ref, bln_ref = rest[idx], rest[idx + 1]
        idx += 2
    w_ref, b_ref = rest[idx], rest[idx + 1]
    idx += 2
    if add_res:
        r_ref = rest[idx]
        idx += 1
    o_ref = rest[idx]

    x = x_ref[...]                                            # (tm, K) f32
    h = x
    if do_ln:
        mu = jnp.mean(h, axis=-1, keepdims=True)
        hc = h - mu
        var = jnp.mean(hc * hc, axis=-1, keepdims=True)
        h = hc * jax.lax.rsqrt(var + 1e-5) * g_ref[...] + bln_ref[...]
    acc = jnp.dot(h.astype(jnp.bfloat16), w_ref[...],
                  preferred_element_type=jnp.float32)          # (tm, N) f32
    acc = acc + b_ref[...]
    if add_x:                                                  # residual == kernel input
        acc = acc + x
    if add_res:                                                # separate residual operand
        acc = acc + r_ref[...]
    o_ref[...] = acc


def _layernorm_kernel(x_ref, g_ref, b_ref, o_ref, *, eps):
    x = x_ref[...]
    mu = jnp.mean(x, axis=-1, keepdims=True)
    xc = x - mu
    var = jnp.mean(xc * xc, axis=-1, keepdims=True)
    o_ref[...] = xc * jax.lax.rsqrt(var + eps) * g_ref[...] + b_ref[...]


def _window_attn_kernel(q_ref, k_ref, v_ref, lepe_ref, o_ref, *, scale):
    # Blocks: (g, N, C) where g = (#windows * #heads) rows processed this step.
    q = q_ref[...].astype(jnp.bfloat16)
    k = k_ref[...].astype(jnp.bfloat16)
    s = jnp.einsum('bqc,bkc->bqk', q, k,
                   preferred_element_type=jnp.float32) * scale      # (g, N, N)
    m = jnp.max(s, axis=-1, keepdims=True)
    p = jnp.exp(s - m)
    l = jnp.sum(p, axis=-1, keepdims=True)
    o = jnp.einsum('bqk,bkc->bqc', p.astype(jnp.bfloat16),
                   v_ref[...].astype(jnp.bfloat16),
                   preferred_element_type=jnp.float32)               # (g, N, C)
    o_ref[...] = o * pl.reciprocal(l, approx=True) + lepe_ref[...]


def _dwconv3x3_kernel(x_ref, w_ref, b_ref, o_ref, *, Hs, Ws):
    # x_ref: (G, Hs+2, Ws+2, C) zero-padded windows; w_ref: (9,1,1,C); b_ref: (1,1,C)
    acc = jnp.zeros(o_ref.shape, jnp.float32) + b_ref[...]
    for dh in range(3):
        for dw in range(3):
            acc = acc + x_ref[:, dh:dh + Hs, dw:dw + Ws, :] * w_ref[dh * 3 + dw]
    o_ref[...] = acc


# ----------------------------------------------------------------------------
# Pallas wrappers (jitted so each unique shape compiles exactly once)
# ----------------------------------------------------------------------------

def _row_tile(M, cap=512):
    """Largest divisor of M that is a multiple of 8 and <= cap; else the full M.
    Avoids any pad/slice copies while keeping big row tiles (HBM roofline)."""
    if M % 8 == 0:
        for t in range(cap, 7, -8):
            if M % t == 0:
                return t
    return M


@functools.partial(jax.jit, static_argnames=("do_ln", "add_res", "add_x"))
def _fused_mm(x, w, b, gamma, beta, res, do_ln, add_res, add_x):
    M, K = x.shape
    N = w.shape[1]
    tm = _row_tile(M)
    ops = [x]
    in_specs = [pl.BlockSpec((tm, K), lambda i: (i, 0))]
    if do_ln:
        ops += [gamma.reshape(1, K), beta.reshape(1, K)]
        in_specs += [pl.BlockSpec((1, K), lambda i: (0, 0)),
                     pl.BlockSpec((1, K), lambda i: (0, 0))]
    ops += [w, b.reshape(1, N)]
    in_specs += [pl.BlockSpec((K, N), lambda i: (0, 0)),
                 pl.BlockSpec((1, N), lambda i: (0, 0))]
    if add_res:
        ops += [res]
        in_specs += [pl.BlockSpec((tm, N), lambda i: (i, 0))]
    return pl.pallas_call(
        functools.partial(_mm_kernel, do_ln=do_ln, add_res=add_res, add_x=add_x),
        out_shape=jax.ShapeDtypeStruct((M, N), jnp.float32),
        grid=(M // tm,),
        in_specs=in_specs,
        out_specs=pl.BlockSpec((tm, N), lambda i: (i, 0)),
        compiler_params=_PARALLEL,
    )(*ops)


def pallas_linear(x, w, b):
    return _fused_mm(x, w, b, None, None, None, do_ln=False, add_res=False, add_x=False)


def pallas_ln_linear(x, gamma, beta, w, b):
    """LayerNorm(x) @ w + b, fused in one kernel."""
    return _fused_mm(x, w, b, gamma, beta, None, do_ln=True, add_res=False, add_x=False)


def pallas_linear_add_input(x, w, b):
    """x + x @ w + b (residual w.r.t. the matmul input, as in the reference proj)."""
    return _fused_mm(x, w, b, None, None, None, do_ln=False, add_res=False, add_x=True)


def pallas_linear_add_res(x, w, b, res):
    """res + x @ w + b (fc2 with fused residual)."""
    return _fused_mm(x, w, b, None, None, res, do_ln=False, add_res=True, add_x=False)


@jax.jit
def pallas_layernorm(x, g, b):
    """Standalone LayerNorm over last dim (eps=1e-5, PyTorch semantics)."""
    M, C = x.shape
    tm = _row_tile(M)
    return pl.pallas_call(
        functools.partial(_layernorm_kernel, eps=1e-5),
        out_shape=jax.ShapeDtypeStruct((M, C), jnp.float32),
        grid=(M // tm,),
        in_specs=[pl.BlockSpec((tm, C), lambda i: (i, 0)),
                  pl.BlockSpec((1, C), lambda i: (0, 0)),
                  pl.BlockSpec((1, C), lambda i: (0, 0))],
        out_specs=pl.BlockSpec((tm, C), lambda i: (i, 0)),
        compiler_params=_PARALLEL,
    )(x, g.reshape(1, C), b.reshape(1, C))


@jax.jit
def pallas_window_attention(q, k, v, lepe):
    """softmax(q k^T * scale) v + lepe over batched (window*head) rows.
    Inputs / output: (BW*heads, N, head_dim)."""
    GH, N, C = q.shape
    scale = float(C) ** -0.5
    g = GH // 2 if GH % 2 == 0 else GH        # 2 grid steps when possible (v7x 2 TCs)
    spec = pl.BlockSpec((g, N, C), lambda i: (i, 0, 0))
    return pl.pallas_call(
        functools.partial(_window_attn_kernel, scale=scale),
        out_shape=jax.ShapeDtypeStruct((GH, N, C), jnp.float32),
        grid=(GH // g,),
        in_specs=[spec, spec, spec, spec],
        out_specs=spec,
        compiler_params=_PARALLEL,
    )(q, k, v, lepe)


@jax.jit
def pallas_dwconv3x3(x, w, b):
    """Depthwise 3x3 conv, stride 1, pad 1, over windows x: (BW, Hs, Ws, C)."""
    BW, Hs, Ws, C = x.shape
    xp = jnp.pad(x, ((0, 0), (1, 1), (1, 1), (0, 0)))
    G = BW // 2 if BW % 2 == 0 else BW        # batch many windows per grid step
    return pl.pallas_call(
        functools.partial(_dwconv3x3_kernel, Hs=Hs, Ws=Ws),
        out_shape=jax.ShapeDtypeStruct((BW, Hs, Ws, C), jnp.float32),
        grid=(BW // G,),
        in_specs=[pl.BlockSpec((G, Hs + 2, Ws + 2, C), lambda i: (i, 0, 0, 0)),
                  pl.BlockSpec((9, 1, 1, C), lambda i: (0, 0, 0, 0)),
                  pl.BlockSpec((1, 1, C), lambda i: (0, 0, 0))],
        out_specs=pl.BlockSpec((G, Hs, Ws, C), lambda i: (i, 0, 0, 0)),
        compiler_params=_PARALLEL,
    )(xp, w.reshape(9, 1, 1, C), b.reshape(1, 1, C))


@functools.partial(jax.jit, static_argnames=("ksize", "stride", "pad"))
def conv2d_im2col(x, w_flat, b, ksize, stride, pad):
    """NHWC conv via im2col (XLA glue) + fused Pallas matmul.  w_flat: (k*k*Cin, Cout)
    flattened with (kh, kw, cin) ordering, stored bf16."""
    B, H, W, Cin = x.shape
    Cout = w_flat.shape[1]
    Hout = (H + 2 * pad - ksize) // stride + 1
    Wout = (W + 2 * pad - ksize) // stride + 1
    xp = jnp.pad(x, ((0, 0), (pad, pad), (pad, pad), (0, 0)))
    cols = []
    for kh in range(ksize):
        for kw in range(ksize):
            cols.append(xp[:, kh:kh + stride * Hout:stride, kw:kw + stride * Wout:stride, :])
    col = jnp.concatenate(cols, axis=-1)                      # (B, Hout, Wout, k*k*Cin)
    out = pallas_linear(col.reshape(B * Hout * Wout, ksize * ksize * Cin), w_flat, b)
    return out.reshape(B, Hout, Wout, Cout)


# ----------------------------------------------------------------------------
# Model blocks (glue around the Pallas kernels)
# ----------------------------------------------------------------------------

def lepe_attention(q, k, v, v_conv_w, v_conv_b, head, res, H_sp, W_sp):
    """One LePEAttention branch.  q/k/v: (B, res*res, Cb)."""
    B, _, Cb = q.shape
    ch = Cb // head
    nh, nw = res // H_sp, res // W_sp
    BW = B * nh * nw
    N = H_sp * W_sp

    def to_windows(t):                                        # (B, res*res, Cb) -> (BW, N, Cb)
        t = t.reshape(B, nh, H_sp, nw, W_sp, Cb)
        t = jnp.transpose(t, (0, 1, 3, 2, 4, 5))
        return t.reshape(BW, N, Cb)

    def split_heads(t):                                       # (BW, N, Cb) -> (BW*head, N, ch)
        return jnp.transpose(t.reshape(BW, N, head, ch), (0, 2, 1, 3)).reshape(BW * head, N, ch)

    qw = split_heads(to_windows(q))
    kw = split_heads(to_windows(k))
    v_win = to_windows(v)
    lepe = pallas_dwconv3x3(v_win.reshape(BW, H_sp, W_sp, Cb), v_conv_w, v_conv_b)
    vw = split_heads(v_win)
    lw = split_heads(lepe.reshape(BW, N, Cb))

    out = pallas_window_attention(qw, kw, vw, lw)             # (BW*head, N, ch)
    out = out.reshape(BW, head, N, ch)
    # head-major channel merge, then the reference's window-major flat reshape
    return jnp.transpose(out, (0, 2, 1, 3)).reshape(B, nh * nw * N, Cb)


def cswin_block(x, p, res, head, split_size, last_stage):
    B, N, C = x.shape
    x2d = x.reshape(B * N, C)
    # fused norm1 + qkv
    qkv = pallas_ln_linear(x2d, p['norm1_g'], p['norm1_b'],
                           p['qkv_w'], p['qkv_b']).reshape(B, N, 3, C)
    q, k, v = qkv[:, :, 0, :], qkv[:, :, 1, :], qkv[:, :, 2, :]

    if last_stage:
        attn = lepe_attention(q, k, v, p['attn0_vw'], p['attn0_vb'], head, res, res, res)
    else:
        Ch, hh = C // 2, head // 2
        x1 = lepe_attention(q[..., :Ch], k[..., :Ch], v[..., :Ch],
                            p['attn0_vw'], p['attn0_vb'], hh, res, res, split_size)
        x2 = lepe_attention(q[..., Ch:], k[..., Ch:], v[..., Ch:],
                            p['attn1_vw'], p['attn1_vb'], hh, res, split_size, res)
        attn = jnp.concatenate([x1, x2], axis=2)

    # DropPath == identity (inference).  Residual w.r.t. attn output, exactly as in the
    # reference (`x = attns(...)` then `x = x + proj(x)`); fused into the proj kernel.
    attn2d = attn.reshape(B * N, C)
    x2d = pallas_linear_add_input(attn2d, p['proj_w'], p['proj_b'])
    # MLP: x = x + fc2(gelu(fc1(norm2(x)))); norm2+fc1 fused, fc2+residual fused.
    h = pallas_ln_linear(x2d, p['norm2_g'], p['norm2_b'], p['fc1_w'], p['fc1_b'])
    # TODO(synk): exact-erf GELU kept as a plain-JAX op between the fused matmuls; fuse
    #             into the fc1 epilogue once erf lowering on Mosaic is guaranteed.
    h = jax.nn.gelu(h, approximate=False)
    x2d = pallas_linear_add_res(h, p['fc2_w'], p['fc2_b'], x2d)
    return x2d.reshape(B, N, C)


def merge_block(x, p):
    B, N, C = x.shape
    H = W = int(math.isqrt(N))
    y = conv2d_im2col(x.reshape(B, H, W, C), p['conv_w'], p['conv_b'], 3, 2, 1)
    _, Ho, Wo, C2 = y.shape
    y = pallas_layernorm(y.reshape(B * Ho * Wo, C2), p['ln_g'], p['ln_b'])
    return y.reshape(B, Ho * Wo, C2)


# ----------------------------------------------------------------------------
# Parameter init (deterministic, synthetic).  Dense matmul weights stored bf16.
# ----------------------------------------------------------------------------

CSWIN_SETTINGS = {'T': (64, [1, 2, 21, 1], [2, 4, 8, 16], 0.1),
                  'S': (64, [2, 4, 32, 2], [2, 4, 8, 16], 0.2),
                  'B': (96, [2, 4, 32, 2], [4, 8, 16, 32], 0.3),
                  'L': (144, [2, 4, 32, 2], [6, 12, 24, 24], 0.5)}


class KeyGen:
    def __init__(self, seed):
        self.key = jax.random.PRNGKey(seed)

    def __call__(self):
        self.key, k = jax.random.split(self.key)
        return k


def trunc_normal(key, shape, std=0.02, dtype=jnp.float32):
    w = std * jax.random.truncated_normal(key, -2.0, 2.0, shape, jnp.float32)
    return w.astype(dtype)


def init_block(kg, dim, head, last_stage):
    bf = jnp.bfloat16
    p = {'norm1_g': jnp.ones((dim,)), 'norm1_b': jnp.zeros((dim,)),
         'qkv_w': trunc_normal(kg(), (dim, 3 * dim), dtype=bf), 'qkv_b': jnp.zeros((3 * dim,)),
         'proj_w': trunc_normal(kg(), (dim, dim), dtype=bf), 'proj_b': jnp.zeros((dim,)),
         'norm2_g': jnp.ones((dim,)), 'norm2_b': jnp.zeros((dim,)),
         'fc1_w': trunc_normal(kg(), (dim, 4 * dim), dtype=bf), 'fc1_b': jnp.zeros((4 * dim,)),
         'fc2_w': trunc_normal(kg(), (4 * dim, dim), dtype=bf), 'fc2_b': jnp.zeros((dim,))}
    n_branch = 1 if last_stage else 2
    bdim = dim if last_stage else dim // 2
    for i in range(n_branch):
        p[f'attn{i}_vw'] = trunc_normal(kg(), (3, 3, bdim))   # depthwise (kh, kw, c), f32
        p[f'attn{i}_vb'] = jnp.zeros((bdim,))
    return p


def init_cswin_params(kg, model_name='T', image_size=224, num_classes=1000):
    bf = jnp.bfloat16
    embed_dim, depths, heads, _ = CSWIN_SETTINGS[model_name]
    split_sizes = [1, 2, 7, 7]
    dims = [embed_dim, embed_dim * 2, embed_dim * 4, embed_dim * 8]
    params = {
        'embed_conv_w': trunc_normal(kg(), (7 * 7 * 3, embed_dim), dtype=bf),
        'embed_conv_b': jnp.zeros((embed_dim,)),
        'embed_ln_g': jnp.ones((embed_dim,)), 'embed_ln_b': jnp.zeros((embed_dim,)),
        'stages': [[init_block(kg, dims[s], heads[s], s == 3) for _ in range(depths[s])]
                   for s in range(4)],
        'merges': [{'conv_w': trunc_normal(kg(), (9 * dims[s], dims[s + 1]), dtype=bf),
                    'conv_b': jnp.zeros((dims[s + 1],)),
                    'ln_g': jnp.ones((dims[s + 1],)), 'ln_b': jnp.zeros((dims[s + 1],))}
                   for s in range(3)],
        'norm_g': jnp.ones((dims[3],)), 'norm_b': jnp.zeros((dims[3],)),
        'head_w': trunc_normal(kg(), (dims[3], num_classes), dtype=bf),
        'head_b': jnp.zeros((num_classes,)),
    }
    cfg = (depths, heads, split_sizes, image_size)
    return params, cfg


# ----------------------------------------------------------------------------
# Full forward
# ----------------------------------------------------------------------------

def cswin_forward(params, cfg, x_nchw):
    depths, heads, split_sizes, image_size = cfg
    x = jnp.transpose(x_nchw, (0, 2, 3, 1)).astype(jnp.float32)       # NCHW -> NHWC
    y = conv2d_im2col(x, params['embed_conv_w'], params['embed_conv_b'], 7, 4, 2)
    B, Ho, Wo, C = y.shape
    x = pallas_layernorm(y.reshape(B * Ho * Wo, C),
                         params['embed_ln_g'], params['embed_ln_b']).reshape(B, Ho * Wo, C)

    res = image_size // 4
    for s in range(4):
        if s > 0:
            x = merge_block(x, params['merges'][s - 1])
            res //= 2
        for blk in params['stages'][s]:
            x = cswin_block(x, blk, res, heads[s], split_sizes[s], last_stage=(s == 3))

    B, N, C = x.shape
    x = pallas_layernorm(x.reshape(B * N, C), params['norm_g'], params['norm_b']).reshape(B, N, C)
    x = jnp.mean(x, axis=1)                                           # (B, C)
    return pallas_linear(x, params['head_w'], params['head_b'])       # (B, num_classes)


# ----------------------------------------------------------------------------

if __name__ == "__main__":
    kg = KeyGen(42)
    # CSWin-T needs (img/16) % 7 == 0 and img % 32 == 0 -> 224 is the minimal valid size.
    params, cfg = init_cswin_params(kg, 'T', image_size=224, num_classes=1000)
    x = jax.random.normal(jax.random.PRNGKey(0), (1, 3, 224, 224), jnp.float32)

    logits = cswin_forward(params, cfg, x)
    logits = jax.block_until_ready(logits)

    assert logits.shape == (1, 1000), logits.shape
    assert bool(jnp.all(jnp.isfinite(logits)))
    print("KERNEL_OK")
</pallas_src>

<mosaic_0001>
module attributes {stable_mosaic.version = 11 : i64} {
  func.func @_mm_kernel(%arg0: i32, %arg1: memref<448x147xf32, #tpu.memory_space<vmem>>, %arg2: memref<147x64xbf16, #tpu.memory_space<vmem>>, %arg3: memref<1x64xf32, #tpu.memory_space<vmem>>, %arg4: memref<448x64xf32, #tpu.memory_space<vmem>>) attributes {dimension_semantics = [#tpu.dimension_semantics<parallel>], iteration_bounds = array<i64: 7>, scalar_prefetch = 0 : i64, scratch_operands = 0 : i64, tpu.core_type = #tpu.core_type<tc>, window_params = [{transform_indices = @transform_0, window_bounds = array<i64: 448, 147>}, {pipeline_mode = #tpu.pipeline_mode<synchronous>, transform_indices = @transform_1, window_bounds = array<i64: 147, 64>}, {pipeline_mode = #tpu.pipeline_mode<synchronous>, transform_indices = @transform_2, window_bounds = array<i64: 1, 64>}, {transform_indices = @transform_3, window_bounds = array<i64: 448, 64>}]} {
    %c0 = arith.constant 0 : index
    %c0_0 = arith.constant 0 : index
    %0 = vector.load %arg1[%c0, %c0_0] : memref<448x147xf32, #tpu.memory_space<vmem>>, vector<448x147xf32>
    %1 = arith.truncf %0 : vector<448x147xf32> to vector<448x147xbf16>
    %c0_1 = arith.constant 0 : index
    %c0_2 = arith.constant 0 : index
    %2 = vector.load %arg2[%c0_1, %c0_2] : memref<147x64xbf16, #tpu.memory_space<vmem>>, vector<147x64xbf16>
    %cst = arith.constant dense<0.000000e+00> : vector<448x64xf32>
    %3 = tpu.matmul %1, %2, %cst {dimension_numbers = #tpu.dot_dimension_numbers<[1], [0], [0], [1], [0, 0, 1, 1], [], []>} : vector<448x147xbf16>, vector<147x64xbf16>, vector<448x64xf32> -> vector<448x64xf32>
    %c0_3 = arith.constant 0 : index
    %c0_4 = arith.constant 0 : index
    %4 = vector.load %arg3[%c0_3, %c0_4] : memref<1x64xf32, #tpu.memory_space<vmem>>, vector<1x64xf32>
    %5 = vector.broadcast %4 : vector<1x64xf32> to vector<448x64xf32>
    %6 = arith.addf %3, %5 : vector<448x64xf32>
    %c0_5 = arith.constant 0 : index
    %c0_6 = arith.constant 0 : index
    %7 = vector.load %arg4[%c0_5, %c0_6] : memref<448x64xf32, #tpu.memory_space<vmem>>, vector<448x64xf32>
    tpu.vector_store %arg4[%c0_5, %c0_6], %6 {strides = array<i32>} : memref<448x64xf32, #tpu.memory_space<vmem>>, vector<448x64xf32>,
    return
  }
  func.func @transform_0(%arg0: i32) -> (i32, i32) {
    %c0_i32 = arith.constant 0 : i32
    %c0_i32_0 = arith.constant 0 : i32
    return %arg0, %c0_i32 : i32, i32
  }
  func.func @transform_1(%arg0: i32) -> (i32, i32) {
    %c0_i32 = arith.constant 0 : i32
    %c0_i32_0 = arith.constant 0 : i32
    %c0_i32_1 = arith.constant 0 : i32
    return %c0_i32, %c0_i32_0 : i32, i32
  }
  func.func @transform_2(%arg0: i32) -> (i32, i32) {
    %c0_i32 = arith.constant 0 : i32
    %c0_i32_0 = arith.constant 0 : i32
    %c0_i32_1 = arith.constant 0 : i32
    return %c0_i32, %c0_i32_0 : i32, i32
  }
  func.func @transform_3(%arg0: i32) -> (i32, i32) {
    %c0_i32 = arith.constant 0 : i32
    %c0_i32_0 = arith.constant 0 : i32
    return %arg0, %c0_i32 : i32, i32
  }
}

</mosaic_0001>

<llo_original>
// kernel: _fused_mm.1
$region0: #{_fused_mm.1}
  #allocation0 [shape = 'u32[]', space=smem, size = 0x4, offset = 0x4, fixed_abs, tag = 'smem constant byte address 0x4 - core index']
  #allocation1 [shape = 'u32[144,128]{1,0:T(1,128)}', space=vmem, size = 0x12000, scoped, tag = 'internal scratch']
  %s0 = inlined_call_operand.vmem [shape: f32[3136,147], index: 0, kind: input, shape index: {}]
  %s1 = inlined_call_operand.vmem [shape: bf16[147,64], index: 1, kind: input, shape index: {}]
  %s2 = inlined_call_operand.vmem [shape: f32[1,64], index: 2, kind: input, shape index: {}]
  %s3 = inlined_call_operand.vmem [shape: f32[3136,64], index: 3, kind: output, shape index: {}]
  %s4 = sld [smem:[#allocation0]]
  $region45: #{_fused_mm.1} parent=0
    _
  %s6 = ssub.s32 1, %s4
  %s7 = scalar_select 0, %s6, %s4
  loop: start=0, step=1, limit=9
  $region2: #{_fused_mm.1} parent=0 // loop_pre_header
    _
  $region3: #{_fused_mm.1} parent=0 // loop_header
    %s9 = sphi 0, %s13
    %p10 = scmp.ge.s32.totalorder %s9, 9
    %s19 = sphi 0, %s21
    %s22 = sphi 0, %s19
    %s23 = sphi 0, %s22
    %s39 = sphi 0, %s23
    %s43 = sphi 0, %s43
    %s45 = sphi 0, %s43
    %s46 = sphi 0, %s45
    %s60 = sphi 0, %s46
    %s64 = sphi 0, %s64
    %s66 = sphi 0, %s64
    %s67 = sphi 0, %s66
    %s81 = sphi 0, %s67
    %s87 = sphi 0, %s89
    %s90 = sphi 0, %s87
    %s91 = sphi 0, %s90
    %s107 = sphi 0, %s91
  $region4: #{_fused_mm.1} parent=0 // loop_header_branch
    %12 = sbr.rel (%p10) target = $region8
  $region5: #{_fused_mm.1} parent=0 // loop_body
    %s14 = ssub.s32 %s9, 1
    %s15 = ssub.s32 %s9, 2
    %s16 = sadd.s32 %s9, 1
    %s17 = ssub.s32 %s9, %s16
    %p18 = scmp.eq.s32.totalorder %s17, 0
    %s20 = sadd.s32 %s19, 1
    %s21 = scalar_select %p18, %s19, %s20
    %p24 = pneg %p18
    %p25 = scmp.eq.s32.totalorder %s9, 6
    %p26 = por %p24, %p25
    %p27 = scmp.ne.s32.totalorder %s19, %s22
    %p28 = scmp.eq.s32.totalorder %s9, 0
    %p29 = por %p27, %p28
    %p30 = scmp.ne.s32.totalorder %s19, %s22
    %p31 = scmp.eq.s32.totalorder %s14, 6
    %p32 = por %p30, %p31
    %p33 = scmp.ne.s32.totalorder %s22, %s23
    %p34 = scmp.eq.s32.totalorder %s14, 0
    %p35 = por %p33, %p34
    %p36 = scmp.ne.s32.totalorder %s22, %s23
    %p37 = scmp.eq.s32.totalorder %s15, 6
    %p38 = por %p36, %p37
    %p40 = scmp.ne.s32.totalorder %s23, %s39
    %p41 = scmp.eq.s32.totalorder %s15, 0
    %p42 = por %p40, %p41
    %s44 = sadd.s32 %s43, 1
    %p47 = scmp.eq.s32.totalorder %s9, 6
    %p48 = scmp.ne.s32.totalorder %s43, %s45
    %p49 = scmp.eq.s32.totalorder %s9, 0
    %p50 = por %p48, %p49
    %p51 = scmp.ne.s32.totalorder %s43, %s45
    %p52 = scmp.eq.s32.totalorder %s14, 6
    %p53 = por %p51, %p52
    %p54 = scmp.ne.s32.totalorder %s45, %s46
    %p55 = scmp.eq.s32.totalorder %s14, 0
    %p56 = por %p54, %p55
    %p57 = scmp.ne.s32.totalorder %s45, %s46
    %p58 = scmp.eq.s32.totalorder %s15, 6
    %p59 = por %p57, %p58
    %p61 = scmp.ne.s32.totalorder %s46, %s60
    %p62 = scmp.eq.s32.totalorder %s15, 0
    %p63 = por %p61, %p62
    %s65 = sadd.s32 %s64, 1
    %p68 = scmp.eq.s32.totalorder %s9, 6
    %p69 = scmp.ne.s32.totalorder %s64, %s66
    %p70 = scmp.eq.s32.totalorder %s9, 0
    %p71 = por %p69, %p70
    %p72 = scmp.ne.s32.totalorder %s64, %s66
    %p73 = scmp.eq.s32.totalorder %s14, 6
    %p74 = por %p72, %p73
    %p75 = scmp.ne.s32.totalorder %s66, %s67
    %p76 = scmp.eq.s32.totalorder %s14, 0
    %p77 = por %p75, %p76
    %p78 = scmp.ne.s32.totalorder %s66, %s67
    %p79 = scmp.eq.s32.totalorder %s15, 6
    %p80 = por %p78, %p79
    %p82 = scmp.ne.s32.totalorder %s67, %s81
    %p83 = scmp.eq.s32.totalorder %s15, 0
    %p84 = por %p82, %p83
    %s85 = ssub.s32 %s9, %s16
    %p86 = scmp.eq.s32.totalorder %s85, 0
    %s88 = sadd.s32 %s87, 1
    %s89 = scalar_select %p86, %s87, %s88
    %p92 = pneg %p86
    %p93 = scmp.eq.s32.totalorder %s9, 6
    %p94 = por %p92, %p93
    %p95 = scmp.ne.s32.totalorder %s87, %s90
    %p96 = scmp.eq.s32.totalorder %s9, 0
    %p97 = por %p95, %p96
    %p98 = scmp.ne.s32.totalorder %s87, %s90
    %p99 = scmp.eq.s32.totalorder %s14, 6
    %p100 = por %p98, %p99
    %p101 = scmp.ne.s32.totalorder %s90, %s91
    %p102 = scmp.eq.s32.totalorder %s14, 0
    %p103 = por %p101, %p102
    %p104 = scmp.ne.s32.totalorder %s90, %s91
    %p105 = scmp.eq.s32.totalorder %s15, 6
    %p106 = por %p104, %p105
    %p108 = scmp.ne.s32.totalorder %s91, %s107
    %p109 = scmp.eq.s32.totalorder %s15, 0
    %p110 = por %p108, %p109
    %p111 = scmp.le.s32.totalorder 1, %s9
    %p112 = scmp.lt.s32.totalorder %s9, 8
    %p113 = pnand %p111, %p112
    %p114 = pneg %p113
    // Predicated region
    $region9: #{_fused_mm.1} parent=5 // pred_check
      _
    $region10: #{_fused_mm.1} parent=5 // pred_check_branch
      %116 = sbr.rel (%p113) target = $region12
    $region11: #{_fused_mm.1} parent=5 // pred_region
      %s117 = ssub.s32 %s9, 1
      // Predicated region
      $region13: #{_fused_mm.1} parent=11 // pred_check
        %p118 = pneg %p56
      $region14: #{_fused_mm.1} parent=11 // pred_check_branch
        %120 = sbr.rel (%p118) target = $region16
      $region15: #{_fused_mm.1} parent=11 // pred_region
        _
      $region16: #{_fused_mm.1} parent=11 // pred_fallthru
        _
      // Predicated region
      $region17: #{_fused_mm.1} parent=11 // pred_check
        %p121 = pneg %p77
      $region18: #{_fused_mm.1} parent=11 // pred_check_branch
        %123 = sbr.rel (%p121) target = $region20
      $region19: #{_fused_mm.1} parent=11 // pred_region
        _
      $region20: #{_fused_mm.1} parent=11 // pred_fallthru
        _
    $region12: #{_fused_mm.1} parent=5 // pred_fallthru
      _
    %p124 = scmp.lt.s32.totalorder %s9, 7
    // Predicated region
    $region21: #{_fused_mm.1} parent=5 // pred_check
      %p125 = pneg %p124
    $region22: #{_fused_mm.1} parent=5 // pred_check_branch
      %127 = sbr.rel (%p125) target = $region24
    $region23: #{_fused_mm.1} parent=5 // pred_region
      // Predicated region
      $region25: #{_fused_mm.1} parent=23 // pred_check
        %p128 = pneg %p29
      $region26: #{_fused_mm.1} parent=23 // pred_check_branch
        %130 = sbr.rel (%p128) target = $region28
      $region27: #{_fused_mm.1} parent=23 // pred_region
        %s131 = smul.u32 56, %s9
        %p132 = scmp.lt.s32.totalorder %s131, 391
        %s133 = scalar_select %p132, %s131, 391
        %s134 = smul.addr %s133, 2
        %s135 = smul.addr %s134, 8
        %s136 = scalar_lea.vmem %s0, %s135
        %s137 = smul.u32 56, %s9
      $region28: #{_fused_mm.1} parent=23 // pred_fallthru
        _
    $region24: #{_fused_mm.1} parent=5 // pred_fallthru
      _
    %p138 = scmp.le.s32.totalorder 1, %s9
    %p139 = scmp.lt.s32.totalorder %s9, 8
    %p140 = pnand %p138, %p139
    %p141 = pneg %p140
    // Predicated region
    $region29: #{_fused_mm.1} parent=5 // pred_check
      _
    $region30: #{_fused_mm.1} parent=5 // pred_check_branch
      %143 = sbr.rel (%p140) target = $region32
    $region31: #{_fused_mm.1} parent=5 // pred_region
      %s144 = ssub.s32 %s9, 1
      %s145 = smul.u32 56, %s14
      %p146 = scmp.lt.s32.totalorder %s145, 391
      %s147 = scalar_select %p146, %s145, 391
      %s148 = smul.addr %s147, 2
      %s149 = smul.addr %s148, 8
      %s150 = scalar_lea.vmem %s0, %s149
      %p151 = pneg %p35
      %p152 = pneg %p32
      %p153 = pneg %p56
      %p154 = pneg %p53
      %p155 = pneg %p77
      %p156 = pneg %p74
      %p157 = pneg %p103
      %p158 = pneg %p100
      %s159 = smul.u32 56, %s14
      %p160 = scmp.lt.s32.totalorder %s159, 391
      %s161 = scalar_select %p160, %s159, 391
      %s162 = smul.addr %s161, 8
      %s163 = scalar_lea.vmem %s3, %s162
      %s164 = smul.u32 56, %s14
      %p165 = scmp.lt.s32.totalorder %s164, 391
      %s166 = scalar_select %p165, %s164, 391
      %s167 = smul.addr %s166, 2
      %s168 = smul.addr %s167, 8
      %s169 = scalar_lea.vmem %s0, %s168
      %s170 = smul.u32 56, %s14
      %s171 = smul.u32 56, %s14
      %p172 = scmp.lt.s32.totalorder %s171, 391
      %s173 = scalar_select %p172, %s171, 391
      %s174 = smul.addr %s173, 8
      %s175 = scalar_lea.vmem %s3, %s174
      %s176 = smul.u32 56, %s14
      %v178 = vld [vmem:[%s169] sm:$0xff]
      %v179 = vld [vmem:[%s169 + $0x8] sm:$0xff]
      %v180 = vld [vmem:[%s169 + $0x10] sm:$0xff]
      %v181 = vld [vmem:[%s169 + $0x18] sm:$0xff]
      %v182 = vld [vmem:[%s169 + $0x20] sm:$0xff]
      %v183 = vld [vmem:[%s169 + $0x28] sm:$0xff]
      %v184 = vld [vmem:[%s169 + $0x30] sm:$0xff]
      %v185 = vld [vmem:[%s169 + $0x38] sm:$0xff]
      %v186 = vld [vmem:[%s169 + $0x40] sm:$0xff]
      %v187 = vld [vmem:[%s169 + $0x48] sm:$0xff]
      %v188 = vld [vmem:[%s169 + $0x50] sm:$0xff]
      %v189 = vld [vmem:[%s169 + $0x58] sm:$0xff]
      %v190 = vld [vmem:[%s169 + $0x60] sm:$0xff]
      %v191 = vld [vmem:[%s169 + $0x68] sm:$0xff]
      %v192 = vld [vmem:[%s169 + $0x70] sm:$0xff]
      %v193 = vld [vmem:[%s169 + $0x78] sm:$0xff]
      %v194 = vld [vmem:[%s169 + $0x80] sm:$0xff]
      %v195 = vld [vmem:[%s169 + $0x88] sm:$0xff]
      %v196 = vld [vmem:[%s169 + $0x90] sm:$0xff]
      %v197 = vld [vmem:[%s169 + $0x98] sm:$0xff]
      %v198 = vld [vmem:[%s169 + $0xa0] sm:$0xff]
      %v199 = vld [vmem:[%s169 + $0xa8] sm:$0xff]
      %v200 = vld [vmem:[%s169 + $0xb0] sm:$0xff]
      %v201 = vld [vmem:[%s169 + $0xb8] sm:$0xff]
      %v202 = vld [vmem:[%s169 + $0xc0] sm:$0xff]
      %v203 = vld [vmem:[%s169 + $0xc8] sm:$0xff]
      %v204 = vld [vmem:[%s169 + $0xd0] sm:$0xff]
      %v205 = vld [vmem:[%s169 + $0xd8] sm:$0xff]
      %v206 = vld [vmem:[%s169 + $0xe0] sm:$0xff]
      %v207 = vld [vmem:[%s169 + $0xe8] sm:$0xff]
      %v208 = vld [vmem:[%s169 + $0xf0] sm:$0xff]
      %v209 = vld [vmem:[%s169 + $0xf8] sm:$0xff]
      %v210 = vld [vmem:[%s169 + $0x100] sm:$0xff]
      %v211 = vld [vmem:[%s169 + $0x108] sm:$0xff]
      %v212 = vld [vmem:[%s169 + $0x110] sm:$0xff]
      %v213 = vld [vmem:[%s169 + $0x118] sm:$0xff]
      %v214 = vld [vmem:[%s169 + $0x120] sm:$0xff]
      %v215 = vld [vmem:[%s169 + $0x128] sm:$0xff]
      %v216 = vld [vmem:[%s169 + $0x130] sm:$0xff]
      %v217 = vld [vmem:[%s169 + $0x138] sm:$0xff]
      %v218 = vld [vmem:[%s169 + $0x140] sm:$0xff]
      %v219 = vld [vmem:[%s169 + $0x148] sm:$0xff]
      %v220 = vld [vmem:[%s169 + $0x150] sm:$0xff]
      %v221 = vld [vmem:[%s169 + $0x158] sm:$0xff]
      %v222 = vld [vmem:[%s169 + $0x160] sm:$0xff]
      %v223 = vld [vmem:[%s169 + $0x168] sm:$0xff]
      %v224 = vld [vmem:[%s169 + $0x170] sm:$0xff]
      %v225 = vld [vmem:[%s169 + $0x178] sm:$0xff]
      %v226 = vld [vmem:[%s169 + $0x180] sm:$0xff]
      %v227 = vld [vmem:[%s169 + $0x188] sm:$0xff]
      %v228 = vld [vmem:[%s169 + $0x190] sm:$0xff]
      %v229 = vld [vmem:[%s169 + $0x198] sm:$0xff]
      %v230 = vld [vmem:[%s169 + $0x1a0] sm:$0xff]
      %v231 = vld [vmem:[%s169 + $0x1a8] sm:$0xff]
      %v232 = vld [vmem:[%s169 + $0x1b0] sm:$0xff]
      %v233 = vld [vmem:[%s169 + $0x1b8] sm:$0xff]
      %v234 = vld [vmem:[%s169 + $0x1c0] sm:$0xff]
      %v235 = vld [vmem:[%s169 + $0x1c8] sm:$0xff]
      %v236 = vld [vmem:[%s169 + $0x1d0] sm:$0xff]
      %v237 = vld [vmem:[%s169 + $0x1d8] sm:$0xff]
      %v238 = vld [vmem:[%s169 + $0x1e0] sm:$0xff]
      %v239 = vld [vmem:[%s169 + $0x1e8] sm:$0xff]
      %v240 = vld [vmem:[%s169 + $0x1f0] sm:$0xff]
      %v241 = vld [vmem:[%s169 + $0x1f8] sm:$0xff]
      %v242 = vld [vmem:[%s169 + $0x200] sm:$0xff]
      %v243 = vld [vmem:[%s169 + $0x208] sm:$0xff]
      %v244 = vld [vmem:[%s169 + $0x210] sm:$0xff]
      %v245 = vld [vmem:[%s169 + $0x218] sm:$0xff]
      %v246 = vld [vmem:[%s169 + $0x220] sm:$0xff]
      %v247 = vld [vmem:[%s169 + $0x228] sm:$0xff]
      %v248 = vld [vmem:[%s169 + $0x230] sm:$0xff]
      %v249 = vld [vmem:[%s169 + $0x238] sm:$0xff]
      %v250 = vld [vmem:[%s169 + $0x240] sm:$0xff]
      %v251 = vld [vmem:[%s169 + $0x248] sm:$0xff]
      %v252 = vld [vmem:[%s169 + $0x250] sm:$0xff]
      %v253 = vld [vmem:[%s169 + $0x258] sm:$0xff]
      %v254 = vld [vmem:[%s169 + $0x260] sm:$0xff]
      %v255 = vld [vmem:[%s169 + $0x268] sm:$0xff]
      %v256 = vld [vmem:[%s169 + $0x270] sm:$0xff]
      %v257 = vld [vmem:[%s169 + $0x278] sm:$0xff]
      %v258 = vld [vmem:[%s169 + $0x280] sm:$0xff]
      %v259 = vld [vmem:[%s169 + $0x288] sm:$0xff]
      %v260 = vld [vmem:[%s169 + $0x290] sm:$0xff]
      %v261 = vld [vmem:[%s169 + $0x298] sm:$0xff]
      %v262 = vld [vmem:[%s169 + $0x2a0] sm:$0xff]
      %v263 = vld [vmem:[%s169 + $0x2a8] sm:$0xff]
      %v264 = vld [vmem:[%s169 + $0x2b0] sm:$0xff]
      %v265 = vld [vmem:[%s169 + $0x2b8] sm:$0xff]
      %v266 = vld [vmem:[%s169 + $0x2c0] sm:$0xff]
      %v267 = vld [vmem:[%s169 + $0x2c8] sm:$0xff]
      %v268 = vld [vmem:[%s169 + $0x2d0] sm:$0xff]
      %v269 = vld [vmem:[%s169 + $0x2d8] sm:$0xff]
      %v270 = vld [vmem:[%s169 + $0x2e0] sm:$0xff]
      %v271 = vld [vmem:[%s169 + $0x2e8] sm:$0xff]
      %v272 = vld [vmem:[%s169 + $0x2f0] sm:$0xff]
      %v273 = vld [vmem:[%s169 + $0x2f8] sm:$0xff]
      %v274 = vld [vmem:[%s169 + $0x300] sm:$0xff]
      %v275 = vld [vmem:[%s169 + $0x308] sm:$0xff]
      %v276 = vld [vmem:[%s169 + $0x310] sm:$0xff]
      %v277 = vld [vmem:[%s169 + $0x318] sm:$0xff]
      %v278 = vld [vmem:[%s169 + $0x320] sm:$0xff]
      %v279 = vld [vmem:[%s169 + $0x328] sm:$0xff]
      %v280 = vld [vmem:[%s169 + $0x330] sm:$0xff]
      %v281 = vld [vmem:[%s169 + $0x338] sm:$0xff]
      %v282 = vld [vmem:[%s169 + $0x340] sm:$0xff]
      %v283 = vld [vmem:[%s169 + $0x348] sm:$0xff]
      %v284 = vld [vmem:[%s169 + $0x350] sm:$0xff]
      %v285 = vld [vmem:[%s169 + $0x358] sm:$0xff]
      %v286 = vld [vmem:[%s169 + $0x360] sm:$0xff]
      %v287 = vld [vmem:[%s169 + $0x368] sm:$0xff]
      %v288 = vld [vmem:[%s169 + $0x370] sm:$0xff]
      %v289 = vld [vmem:[%s169 + $0x378] sm:$0xff]
      %v290 = vpack.c.bf16 %v180, %v178
      %v291 = vpack.c.bf16 %v181, %v179
      %v292 = vpack.c.bf16 %v184, %v182
      %v293 = vpack.c.bf16 %v185, %v183
      %v294 = vpack.c.bf16 %v188, %v186
      %v295 = vpack.c.bf16 %v189, %v187
      %v296 = vpack.c.bf16 %v192, %v190
      %v297 = vpack.c.bf16 %v193, %v191
      %v298 = vpack.c.bf16 %v196, %v194
      %v299 = vpack.c.bf16 %v197, %v195
      %v300 = vpack.c.bf16 %v200, %v198
      %v301 = vpack.c.bf16 %v201, %v199
      %v302 = vpack.c.bf16 %v204, %v202
      %v303 = vpack.c.bf16 %v205, %v203
      %v304 = vpack.c.bf16 %v208, %v206
      %v305 = vpack.c.bf16 %v209, %v207
      %v306 = vpack.c.bf16 %v212, %v210
      %v307 = vpack.c.bf16 %v213, %v211
      %v308 = vpack.c.bf16 %v216, %v214
      %v309 = vpack.c.bf16 %v217, %v215
      %v310 = vpack.c.bf16 %v220, %v218
      %v311 = vpack.c.bf16 %v221, %v219
      %v312 = vpack.c.bf16 %v224, %v222
      %v313 = vpack.c.bf16 %v225, %v223
      %v314 = vpack.c.bf16 %v228, %v226
      %v315 = vpack.c.bf16 %v229, %v227
      %v316 = vpack.c.bf16 %v232, %v230
      %v317 = vpack.c.bf16 %v233, %v231
      %v318 = vpack.c.bf16 %v236, %v234
      %v319 = vpack.c.bf16 %v237, %v235
      %v320 = vpack.c.bf16 %v240, %v238
      %v321 = vpack.c.bf16 %v241, %v239
      %v322 = vpack.c.bf16 %v244, %v242
      %v323 = vpack.c.bf16 %v245, %v243
      %v324 = vpack.c.bf16 %v248, %v246
      %v325 = vpack.c.bf16 %v249, %v247
      %v326 = vpack.c.bf16 %v252, %v250
      %v327 = vpack.c.bf16 %v253, %v251
      %v328 = vpack.c.bf16 %v256, %v254
      %v329 = vpack.c.bf16 %v257, %v255
      %v330 = vpack.c.bf16 %v260, %v258
      %v331 = vpack.c.bf16 %v261, %v259
      %v332 = vpack.c.bf16 %v264, %v262
      %v333 = vpack.c.bf16 %v265, %v263
      %v334 = vpack.c.bf16 %v268, %v266
      %v335 = vpack.c.bf16 %v269, %v267
      %v336 = vpack.c.bf16 %v272, %v270
      %v337 = vpack.c.bf16 %v273, %v271
      %v338 = vpack.c.bf16 %v276, %v274
      %v339 = vpack.c.bf16 %v277, %v275
      %v340 = vpack.c.bf16 %v280, %v278
      %v341 = vpack.c.bf16 %v281, %v279
      %v342 = vpack.c.bf16 %v284, %v282
      %v343 = vpack.c.bf16 %v285, %v283
      %v344 = vpack.c.bf16 %v288, %v286
      %v345 = vpack.c.bf16 %v289, %v287
      %v346 = vld [vmem:[%s1] sm:$0xf]
      %v347 = vld [vmem:[%s1 + $0x4] sm:$0xf]
      %v348 = vld [vmem:[%s1 + $0x8] sm:$0xf]
      %v349 = vld [vmem:[%s1 + $0xc] sm:$0xf]
      %v350 = vld [vmem:[%s1 + $0x10] sm:$0xf]
      %v351 = vld [vmem:[%s1 + $0x14] sm:$0xf]
      %v352 = vld [vmem:[%s1 + $0x18] sm:$0xf]
      %v353 = vld [vmem:[%s1 + $0x1c] sm:$0xf]
      %v354 = vld [vmem:[%s1 + $0x20] sm:$0xf]
      %v355 = vld [vmem:[%s1 + $0x24] sm:$0xf]
      %v356 = vld [vmem:[%s1 + $0x28] sm:$0xf]
      %v357 = vld [vmem:[%s1 + $0x2c] sm:$0xf]
      %v358 = vld [vmem:[%s1 + $0x30] sm:$0xf]
      %v359 = vld [vmem:[%s1 + $0x34] sm:$0xf]
      %v360 = vld [vmem:[%s1 + $0x38] sm:$0xf]
      %v361 = vld [vmem:[%s1 + $0x3c] sm:$0xf]
      %v362 = vld [vmem:[%s1 + $0x40] sm:$0xf]
      %v363 = vld [vmem:[%s1 + $0x44] sm:$0xf]
      %v364 = vld [vmem:[%s1 + $0x48] sm:$0x3]
      %v365 = vld [vmem:[%s2] sm:$0x1]
      %v367 = vlaneseq
      %v368 = vshrl.u32 %v367, 7
      %v369 = vsub.s32 0, %v368
      %v370 = vrot.slane %v365, %v369
      %v391 = vunpack.c.l.b16 %v346
      %v392 = vunpack.c.l.b16 %v347
      %v393 = vunpack.c.l.b16 %v348
      %v394 = vunpack.c.l.b16 %v349
      %v395 = vunpack.c.l.b16 %v350
      %v396 = vunpack.c.l.b16 %v351
      %v397 = vunpack.c.l.b16 %v352
      %v398 = vunpack.c.l.b16 %v353
      %v399 = vunpack.c.l.b16 %v354
      %v400 = vunpack.c.l.b16 %v355
      %v401 = vunpack.c.l.b16 %v356
      %v402 = vunpack.c.l.b16 %v357
      %v403 = vunpack.c.l.b16 %v358
      %v404 = vunpack.c.l.b16 %v359
      %v405 = vunpack.c.l.b16 %v360
      %v406 = vunpack.c.l.b16 %v361
      %v407 = vunpack.c.l.b16 %v362
      %v408 = vunpack.c.l.b16 %v363
      %v409 = vunpack.c.l.b16 %v364
      %v410 = vpack.c.b16 %v392, %v391
      %v411 = vpack.c.b16 %v394, %v393
      %v412 = vpack.c.b16 %v396, %v395
      %v413 = vpack.c.b16 %v398, %v397
      %v414 = vpack.c.b16 %v400, %v399
      %v415 = vpack.c.b16 %v402, %v401
      %v416 = vpack.c.b16 %v404, %v403
      %v417 = vpack.c.b16 %v406, %v405
      %v418 = vpack.c.b16 %v408, %v407
      %v419 = vpack.c.b16 %v409, %v409
      %vm429 = vcmask 154624
      %v431 = vsel %vm429, %v291, 0
      %v434 = vsel %vm429, %v293, 0
      %v437 = vsel %vm429, %v295, 0
      %v440 = vsel %vm429, %v297, 0
      %v443 = vsel %vm429, %v299, 0
      %v446 = vsel %vm429, %v301, 0
      %v449 = vsel %vm429, %v303, 0
      %v452 = vsel %vm429, %v305, 0
      %v455 = vsel %vm429, %v307, 0
      %v458 = vsel %vm429, %v309, 0
      %v461 = vsel %vm429, %v311, 0
      %v464 = vsel %vm429, %v313, 0
      %v467 = vsel %vm429, %v315, 0
      %v470 = vsel %vm429, %v317, 0
      %v473 = vsel %vm429, %v319, 0
      %v476 = vsel %vm429, %v321, 0
      %v479 = vsel %vm429, %v323, 0
      %v482 = vsel %vm429, %v325, 0
      %v485 = vsel %vm429, %v327, 0
      %v488 = vsel %vm429, %v329, 0
      %v491 = vsel %vm429, %v331, 0
      %v494 = vsel %vm429, %v333, 0
      %v497 = vsel %vm429, %v335, 0
      %v500 = vsel %vm429, %v337, 0
      %v503 = vsel %vm429, %v339, 0
      %v506 = vsel %vm429, %v341, 0
      %v509 = vsel %vm429, %v343, 0
      %v512 = vsel %vm429, %v345, 0
      %vm514 = vcmask 1040384
      %vm515 = vcmask 1041408
      %v516 = vsel %vm514, 4294967295, 65535
      %v517 = vsel %vm515, %v516, 0
      %v519 = vand.u32 %v419, %v517
      %521 = vmatprep.subr.bf16.mxu0 0
      %522 = vmatpush1.bf16.msra.mxu0 %v410
      %523 = vmatprep.subr.bf16.mxu0 0
      %524 = vmatpush1.bf16.msra.mxu0 %v411
      %525 = vmatprep.subr.bf16.mxu0 0
      %526 = vmatpush1.bf16.msra.mxu0 %v412
      %527 = vmatprep.subr.bf16.mxu0 0
      %528 = vmatpush1.bf16.msra.mxu0 %v413
      %529 = vmatprep.subr.bf16.mxu0 0
      %530 = vmatpush1.bf16.msra.mxu0 %v414
      %531 = vmatprep.subr.bf16.mxu0 0
      %532 = vmatpush1.bf16.msra.mxu0 %v415
      %533 = vmatprep.subr.bf16.mxu0 0
      %534 = vmatpush1.bf16.msra.mxu0 %v416
      %535 = vmatprep.subr.bf16.mxu0 0
      %536 = vmatpush1.bf16.msra.mxu0 %v417
      %537 = vmatprep.subr.bf16.mxu0 0
      %538 = vmatpush1.bf16.msra.mxu0 %v418
      %539 = vmatprep.subr.bf16.mxu0 0
      %540 = vmatpush1.bf16.msra.mxu0 %v519
      %541 = vmatprep.subr.bf16.mxu0 0
      %542 = vmatpush1.bf16.msra.mxu0 0
      %543 = vmatprep.subr.bf16.mxu0 0
      %544 = vmatpush1.bf16.msra.mxu0 0
      %545 = vmatprep.subr.bf16.mxu0 0
      %546 = vmatpush1.bf16.msra.mxu0 0
      %547 = vmatprep.subr.bf16.mxu0 0
      %548 = vmatpush1.bf16.msra.mxu0 0
      %549 = vmatprep.subr.bf16.mxu0 0
      %550 = vmatpush1.bf16.msra.mxu0 0
      %551 = vmatprep.subr.bf16.mxu0 0
      %552 = vmatpush1.bf16.msra.mxu0 0
      %553 = vmatprep.mubr.bf16.mxu0 %v431
      %554 = vmatmul.mubr.bf16.gmra.mrb[0].mxu0 %v290
      %v555 = vpop.f32.mrb[0].mxu0
      %v556 = vadd.f32 %v370, %v555
      %v557 = vpop.f32.mrb[0].mxu0
      %v558 = vpop.f32.mrb[0].mxu0
      %v559 = vadd.f32 %v370, %v558
      %v560 = vpop.f32.mrb[0].mxu0
      %561 = vmatprep.mubr.bf16.mxu0 %v434
      %562 = vmatmul.mubr.bf16.gmra.mrb[0].mxu0 %v292
      %v563 = vpop.f32.mrb[0].mxu0
      %v564 = vadd.f32 %v370, %v563
      %v565 = vpop.f32.mrb[0].mxu0
      %v566 = vpop.f32.mrb[0].mxu0
      %v567 = vadd.f32 %v370, %v566
      %v568 = vpop.f32.mrb[0].mxu0
      %569 = vmatprep.mubr.bf16.mxu0 %v437
      %570 = vmatmul.mubr.bf16.gmra.mrb[0].mxu0 %v294
      %v571 = vpop.f32.mrb[0].mxu0
      %v572 = vadd.f32 %v370, %v571
      %v573 = vpop.f32.mrb[0].mxu0
      %v574 = vpop.f32.mrb[0].mxu0
      %v575 = vadd.f32 %v370, %v574
      %v576 = vpop.f32.mrb[0].mxu0
      %577 = vmatprep.mubr.bf16.mxu0 %v440
      %578 = vmatmul.mubr.bf16.gmra.mrb[0].mxu0 %v296
      %v579 = vpop.f32.mrb[0].mxu0
      %v580 = vadd.f32 %v370, %v579
      %v581 = vpop.f32.mrb[0].mxu0
      %v582 = vpop.f32.mrb[0].mxu0
      %v583 = vadd.f32 %v370, %v582
      %v584 = vpop.f32.mrb[0].mxu0
      %585 = vmatprep.mubr.bf16.mxu0 %v443
      %586 = vmatmul.mubr.bf16.gmra.mrb[0].mxu0 %v298
      %v587 = vpop.f32.mrb[0].mxu0
      %v588 = vadd.f32 %v370, %v587
      %v589 = vpop.f32.mrb[0].mxu0
      %v590 = vpop.f32.mrb[0].mxu0
      %v591 = vadd.f32 %v370, %v590
      %v592 = vpop.f32.mrb[0].mxu0
      %593 = vmatprep.mubr.bf16.mxu0 %v446
      %594 = vmatmul.mubr.bf16.gmra.mrb[0].mxu0 %v300
      %v595 = vpop.f32.mrb[0].mxu0
      %v596 = vadd.f32 %v370, %v595
      %v597 = vpop.f32.mrb[0].mxu0
      %v598 = vpop.f32.mrb[0].mxu0
      %v599 = vadd.f32 %v370, %v598
      %v600 = vpop.f32.mrb[0].mxu0
      %601 = vmatprep.mubr.bf16.mxu0 %v449
      %602 = vmatmul.mubr.bf16.gmra.mrb[0].mxu0 %v302
      %v603 = vpop.f32.mrb[0].mxu0
      %v604 = vadd.f32 %v370, %v603
      %v605 = vpop.f32.mrb[0].mxu0
      %v606 = vpop.f32.mrb[0].mxu0
      %v607 = vadd.f32 %v370, %v606
      %v608 = vpop.f32.mrb[0].mxu0
      %609 = vmatprep.mubr.bf16.mxu0 %v452
      %610 = vmatmul.mubr.bf16.gmra.mrb[0].mxu0 %v304
      %v611 = vpop.f32.mrb[0].mxu0
      %v612 = vadd.f32 %v370, %v611
      %v613 = vpop.f32.mrb[0].mxu0
      %v614 = vpop.f32.mrb[0].mxu0
      %v615 = vadd.f32 %v370, %v614
      %v616 = vpop.f32.mrb[0].mxu0
      %617 = vmatprep.mubr.bf16.mxu0 %v455
      %618 = vmatmul.mubr.bf16.gmra.mrb[0].mxu0 %v306
      %v619 = vpop.f32.mrb[0].mxu0
      %v620 = vadd.f32 %v370, %v619
      %v621 = vpop.f32.mrb[0].mxu0
      %v622 = vpop.f32.mrb[0].mxu0
      %v623 = vadd.f32 %v370, %v622
      %v624 = vpop.f32.mrb[0].mxu0
      %625 = vmatprep.mubr.bf16.mxu0 %v458
      %626 = vmatmul.mubr.bf16.gmra.mrb[0].mxu0 %v308
      %v627 = vpop.f32.mrb[0].mxu0
      %v628 = vadd.f32 %v370, %v627
      %v629 = vpop.f32.mrb[0].mxu0
      %v630 = vpop.f32.mrb[0].mxu0
      %v631 = vadd.f32 %v370, %v630
      %v632 = vpop.f32.mrb[0].mxu0
      %633 = vmatprep.mubr.bf16.mxu0 %v461
      %634 = vmatmul.mubr.bf16.gmra.mrb[0].mxu0 %v310
      %v635 = vpop.f32.mrb[0].mxu0
      %v636 = vadd.f32 %v370, %v635
      %v637 = vpop.f32.mrb[0].mxu0
      %v638 = vpop.f32.mrb[0].mxu0
      %v639 = vadd.f32 %v370, %v638
      %v640 = vpop.f32.mrb[0].mxu0
      %641 = vmatprep.mubr.bf16.mxu0 %v464
      %642 = vmatmul.mubr.bf16.gmra.mrb[0].mxu0 %v312
      %v643 = vpop.f32.mrb[0].mxu0
      %v644 = vadd.f32 %v370, %v643
      %v645 = vpop.f32.mrb[0].mxu0
      %v646 = vpop.f32.mrb[0].mxu0
      %v647 = vadd.f32 %v370, %v646
      %v648 = vpop.f32.mrb[0].mxu0
      %649 = vmatprep.mubr.bf16.mxu0 %v467
      %650 = vmatmul.mubr.bf16.gmra.mrb[0].mxu0 %v314
      %v651 = vpop.f32.mrb[0].mxu0
      %v652 = vadd.f32 %v370, %v651
      %v653 = vpop.f32.mrb[0].mxu0
      %v654 = vpop.f32.mrb[0].mxu0
      %v655 = vadd.f32 %v370, %v654
      %v656 = vpop.f32.mrb[0].mxu0
      %657 = vmatprep.mubr.bf16.mxu0 %v470
      %658 = vmatmul.mubr.bf16.gmra.mrb[0].mxu0 %v316
      %v659 = vpop.f32.mrb[0].mxu0
      %v660 = vadd.f32 %v370, %v659
      %v661 = vpop.f32.mrb[0].mxu0
      %v662 = vpop.f32.mrb[0].mxu0
      %v663 = vadd.f32 %v370, %v662
      %v664 = vpop.f32.mrb[0].mxu0
      %665 = vmatprep.mubr.bf16.mxu0 %v473
      %666 = vmatmul.mubr.bf16.gmra.mrb[0].mxu0 %v318
      %v667 = vpop.f32.mrb[0].mxu0
      %v668 = vadd.f32 %v370, %v667
      %v669 = vpop.f32.mrb[0].mxu0
      %v670 = vpop.f32.mrb[0].mxu0
      %v671 = vadd.f32 %v370, %v670
      %v672 = vpop.f32.mrb[0].mxu0
      %673 = vmatprep.mubr.bf16.mxu0 %v476
      %674 = vmatmul.mubr.bf16.gmra.mrb[0].mxu0 %v320
      %v675 = vpop.f32.mrb[0].mxu0
      %v676 = vadd.f32 %v370, %v675
      %v677 = vpop.f32.mrb[0].mxu0
      %v678 = vpop.f32.mrb[0].mxu0
      %v679 = vadd.f32 %v370, %v678
      %v680 = vpop.f32.mrb[0].mxu0
      %681 = vmatprep.mubr.bf16.mxu0 %v479
      %682 = vmatmul.mubr.bf16.gmra.mrb[0].mxu0 %v322
      %v683 = vpop.f32.mrb[0].mxu0
      %v684 = vadd.f32 %v370, %v683
      %v685 = vpop.f32.mrb[0].mxu0
      %v686 = vpop.f32.mrb[0].mxu0
      %v687 = vadd.f32 %v370, %v686
      %v688 = vpop.f32.mrb[0].mxu0
      %689 = vmatprep.mubr.bf16.mxu0 %v482
      %690 = vmatmul.mubr.bf16.gmra.mrb[0].mxu0 %v324
      %v691 = vpop.f32.mrb[0].mxu0
      %v692 = vadd.f32 %v370, %v691
      %v693 = vpop.f32.mrb[0].mxu0
      %v694 = vpop.f32.mrb[0].mxu0
      %v695 = vadd.f32 %v370, %v694
      %v696 = vpop.f32.mrb[0].mxu0
      %697 = vmatprep.mubr.bf16.mxu0 %v485
      %698 = vmatmul.mubr.bf16.gmra.mrb[0].mxu0 %v326
      %v699 = vpop.f32.mrb[0].mxu0
      %v700 = vadd.f32 %v370, %v699
      %v701 = vpop.f32.mrb[0].mxu0
      %v702 = vpop.f32.mrb[0].mxu0
      %v703 = vadd.f32 %v370, %v702
      %v704 = vpop.f32.mrb[0].mxu0
      %705 = vmatprep.mubr.bf16.mxu0 %v488
      %706 = vmatmul.mubr.bf16.gmra.mrb[0].mxu0 %v328
      %v707 = vpop.f32.mrb[0].mxu0
      %v708 = vadd.f32 %v370, %v707
      %v709 = vpop.f32.mrb[0].mxu0
      %v710 = vpop.f32.mrb[0].mxu0
      %v711 = vadd.f32 %v370, %v710
      %v712 = vpop.f32.mrb[0].mxu0
      %713 = vmatprep.mubr.bf16.mxu0 %v491
      %714 = vmatmul.mubr.bf16.gmra.mrb[0].mxu0 %v330
      %v715 = vpop.f32.mrb[0].mxu0
      %v716 = vadd.f32 %v370, %v715
      %v717 = vpop.f32.mrb[0].mxu0
      %v718 = vpop.f32.mrb[0].mxu0
      %v719 = vadd.f32 %v370, %v718
      %v720 = vpop.f32.mrb[0].mxu0
      %721 = vmatprep.mubr.bf16.mxu0 %v494
      %722 = vmatmul.mubr.bf16.gmra.mrb[0].mxu0 %v332
      %v723 = vpop.f32.mrb[0].mxu0
      %v724 = vadd.f32 %v370, %v723
      %v725 = vpop.f32.mrb[0].mxu0
      %v726 = vpop.f32.mrb[0].mxu0
      %v727 = vadd.f32 %v370, %v726
      %v728 = vpop.f32.mrb[0].mxu0
      %729 = vmatprep.mubr.bf16.mxu0 %v497
      %730 = vmatmul.mubr.bf16.gmra.mrb[0].mxu0 %v334
      %v731 = vpop.f32.mrb[0].mxu0
      %v732 = vadd.f32 %v370, %v731
      %v733 = vpop.f32.mrb[0].mxu0
      %v734 = vpop.f32.mrb[0].mxu0
      %v735 = vadd.f32 %v370, %v734
      %v736 = vpop.f32.mrb[0].mxu0
      %737 = vmatprep.mubr.bf16.mxu0 %v500
      %738 = vmatmul.mubr.bf16.gmra.mrb[0].mxu0 %v336
      %v739 = vpop.f32.mrb[0].mxu0
      %v740 = vadd.f32 %v370, %v739
      %v741 = vpop.f32.mrb[0].mxu0
      %v742 = vpop.f32.mrb[0].mxu0
      %v743 = vadd.f32 %v370, %v742
      %v744 = vpop.f32.mrb[0].mxu0
      %745 = vmatprep.mubr.bf16.mxu0 %v503
      %746 = vmatmul.mubr.bf16.gmra.mrb[0].mxu0 %v338
      %v747 = vpop.f32.mrb[0].mxu0
      %v748 = vadd.f32 %v370, %v747
      %v749 = vpop.f32.mrb[0].mxu0
      %v750 = vpop.f32.mrb[0].mxu0
      %v751 = vadd.f32 %v370, %v750
      %v752 = vpop.f32.mrb[0].mxu0
      %753 = vmatprep.mubr.bf16.mxu0 %v506
      %754 = vmatmul.mubr.bf16.gmra.mrb[0].mxu0 %v340
      %v755 = vpop.f32.mrb[0].mxu0
      %v756 = vadd.f32 %v370, %v755
      %v757 = vpop.f32.mrb[0].mxu0
      %v758 = vpop.f32.mrb[0].mxu0
      %v759 = vadd.f32 %v370, %v758
      %v760 = vpop.f32.mrb[0].mxu0
      %761 = vmatprep.mubr.bf16.mxu0 %v509
      %762 = vmatmul.mubr.bf16.gmra.mrb[0].mxu0 %v342
      %v763 = vpop.f32.mrb[0].mxu0
      %v764 = vadd.f32 %v370, %v763
      %v765 = vpop.f32.mrb[0].mxu0
      %v766 = vpop.f32.mrb[0].mxu0
      %v767 = vadd.f32 %v370, %v766
      %v768 = vpop.f32.mrb[0].mxu0
      %769 = vmatprep.mubr.bf16.mxu0 %v512
      %770 = vmatmul.mubr.bf16.gmra.mrb[0].mxu0 %v344
      %v771 = vpop.f32.mrb[0].mxu0
      %v772 = vadd.f32 %v370, %v771
      %v773 = vpop.f32.mrb[0].mxu0
      %v774 = vpop.f32.mrb[0].mxu0
      %v775 = vadd.f32 %v370, %v774
      %v776 = vpop.f32.mrb[0].mxu0
      %777 = vdwg.mxu0
      %vm778 = vcmask 523264
      %779 = vst.msk [vmem:[%s175] sm:$0xff] %vm778, %v556
      %780 = vst.msk [vmem:[%s175 + $0x8] sm:$0xff] %vm778, %v559
      %781 = vst.msk [vmem:[%s175 + $0x10] sm:$0xff] %vm778, %v564
      %782 = vst.msk [vmem:[%s175 + $0x18] sm:$0xff] %vm778, %v567
      %783 = vst.msk [vmem:[%s175 + $0x20] sm:$0xff] %vm778, %v572
      %784 = vst.msk [vmem:[%s175 + $0x28] sm:$0xff] %vm778, %v575
      %785 = vst.msk [vmem:[%s175 + $0x30] sm:$0xff] %vm778, %v580
      %786 = vst.msk [vmem:[%s175 + $0x38] sm:$0xff] %vm778, %v583
      %787 = vst.msk [vmem:[%s175 + $0x40] sm:$0xff] %vm778, %v588
      %788 = vst.msk [vmem:[%s175 + $0x48] sm:$0xff] %vm778, %v591
      %789 = vst.msk [vmem:[%s175 + $0x50] sm:$0xff] %vm778, %v596
      %790 = vst.msk [vmem:[%s175 + $0x58] sm:$0xff] %vm778, %v599
      %791 = vst.msk [vmem:[%s175 + $0x60] sm:$0xff] %vm778, %v604
      %792 = vst.msk [vmem:[%s175 + $0x68] sm:$0xff] %vm778, %v607
      %793 = vst.msk [vmem:[%s175 + $0x70] sm:$0xff] %vm778, %v612
      %794 = vst.msk [vmem:[%s175 + $0x78] sm:$0xff] %vm778, %v615
      %795 = vst.msk [vmem:[%s175 + $0x80] sm:$0xff] %vm778, %v620
      %796 = vst.msk [vmem:[%s175 + $0x88] sm:$0xff] %vm778, %v623
      %797 = vst.msk [vmem:[%s175 + $0x90] sm:$0xff] %vm778, %v628
      %798 = vst.msk [vmem:[%s175 + $0x98] sm:$0xff] %vm778, %v631
      %799 = vst.msk [vmem:[%s175 + $0xa0] sm:$0xff] %vm778, %v636
      %800 = vst.msk [vmem:[%s175 + $0xa8] sm:$0xff] %vm778, %v639
      %801 = vst.msk [vmem:[%s175 + $0xb0] sm:$0xff] %vm778, %v644
      %802 = vst.msk [vmem:[%s175 + $0xb8] sm:$0xff] %vm778, %v647
      %803 = vst.msk [vmem:[%s175 + $0xc0] sm:$0xff] %vm778, %v652
      %804 = vst.msk [vmem:[%s175 + $0xc8] sm:$0xff] %vm778, %v655
      %805 = vst.msk [vmem:[%s175 + $0xd0] sm:$0xff] %vm778, %v660
      %806 = vst.msk [vmem:[%s175 + $0xd8] sm:$0xff] %vm778, %v663
      %807 = vst.msk [vmem:[%s175 + $0xe0] sm:$0xff] %vm778, %v668
      %808 = vst.msk [vmem:[%s175 + $0xe8] sm:$0xff] %vm778, %v671
      %809 = vst.msk [vmem:[%s175 + $0xf0] sm:$0xff] %vm778, %v676
      %810 = vst.msk [vmem:[%s175 + $0xf8] sm:$0xff] %vm778, %v679
      %811 = vst.msk [vmem:[%s175 + $0x100] sm:$0xff] %vm778, %v684
      %812 = vst.msk [vmem:[%s175 + $0x108] sm:$0xff] %vm778, %v687
      %813 = vst.msk [vmem:[%s175 + $0x110] sm:$0xff] %vm778, %v692
      %814 = vst.msk [vmem:[%s175 + $0x118] sm:$0xff] %vm778, %v695
      %815 = vst.msk [vmem:[%s175 + $0x120] sm:$0xff] %vm778, %v700
      %816 = vst.msk [vmem:[%s175 + $0x128] sm:$0xff] %vm778, %v703
      %817 = vst.msk [vmem:[%s175 + $0x130] sm:$0xff] %vm778, %v708
      %818 = vst.msk [vmem:[%s175 + $0x138] sm:$0xff] %vm778, %v711
      %819 = vst.msk [vmem:[%s175 + $0x140] sm:$0xff] %vm778, %v716
      %820 = vst.msk [vmem:[%s175 + $0x148] sm:$0xff] %vm778, %v719
      %821 = vst.msk [vmem:[%s175 + $0x150] sm:$0xff] %vm778, %v724
      %822 = vst.msk [vmem:[%s175 + $0x158] sm:$0xff] %vm778, %v727
      %823 = vst.msk [vmem:[%s175 + $0x160] sm:$0xff] %vm778, %v732
      %824 = vst.msk [vmem:[%s175 + $0x168] sm:$0xff] %vm778, %v735
      %825 = vst.msk [vmem:[%s175 + $0x170] sm:$0xff] %vm778, %v740
      %826 = vst.msk [vmem:[%s175 + $0x178] sm:$0xff] %vm778, %v743
      %827 = vst.msk [vmem:[%s175 + $0x180] sm:$0xff] %vm778, %v748
      %828 = vst.msk [vmem:[%s175 + $0x188] sm:$0xff] %vm778, %v751
      %829 = vst.msk [vmem:[%s175 + $0x190] sm:$0xff] %vm778, %v756
      %830 = vst.msk [vmem:[%s175 + $0x198] sm:$0xff] %vm778, %v759
      %831 = vst.msk [vmem:[%s175 + $0x1a0] sm:$0xff] %vm778, %v764
      %832 = vst.msk [vmem:[%s175 + $0x1a8] sm:$0xff] %vm778, %v767
      %833 = vst.msk [vmem:[%s175 + $0x1b0] sm:$0xff] %vm778, %v772
      %834 = vst.msk [vmem:[%s175 + $0x1b8] sm:$0xff] %vm778, %v775
      %s835 = smul.u32 56, %s14
      %p836 = scmp.lt.s32.totalorder %s835, 391
      %s837 = scalar_select %p836, %s835, 391
      %s838 = smul.addr %s837, 8
      %s839 = scalar_lea.vmem %s3, %s838
      // Predicated region
      $region33: #{_fused_mm.1} parent=31 // pred_check
        %p840 = pneg %p100
      $region34: #{_fused_mm.1} parent=31 // pred_check_branch
        %842 = sbr.rel (%p840) target = $region36
      $region35: #{_fused_mm.1} parent=31 // pred_region
        %s843 = smul.u32 56, %s14
      $region36: #{_fused_mm.1} parent=31 // pred_fallthru
        _
    $region32: #{_fused_mm.1} parent=5 // pred_fallthru
      _
    %p844 = scmp.le.s32.totalorder 2, %s9
    // Predicated region
    $region37: #{_fused_mm.1} parent=5 // pred_check
      %p845 = pneg %p844
    $region38: #{_fused_mm.1} parent=5 // pred_check_branch
      %847 = sbr.rel (%p845) target = $region40
    $region39: #{_fused_mm.1} parent=5 // pred_region
      %s848 = ssub.s32 %s9, 2
      // Predicated region
      $region41: #{_fused_mm.1} parent=39 // pred_check
        %p849 = pneg %p106
      $region42: #{_fused_mm.1} parent=39 // pred_check_branch
        %851 = sbr.rel (%p849) target = $region44
      $region43: #{_fused_mm.1} parent=39 // pred_region
        %s852 = smul.u32 56, %s15
        %p853 = scmp.lt.s32.totalorder %s852, 391
        %s854 = scalar_select %p853, %s852, 391
        %s855 = smul.addr %s854, 8
        %s856 = scalar_lea.vmem %s3, %s855
      $region44: #{_fused_mm.1} parent=39 // pred_fallthru
        _
    $region40: #{_fused_mm.1} parent=5 // pred_fallthru
      _
  $region6: #{_fused_mm.1} parent=0 // loop_footer
    %s13 = sadd.s32 1, %s9
  $region7: #{_fused_mm.1} parent=0 // loop_footer_branch
    %8 = sbr.rel target = $region3
  $region8: #{_fused_mm.1} parent=0 // loop_exit
    _

</llo_original>
